<compile_context>
chip_gen: v7x
topology: tpu7x:2x2x1
jax: 0.10.0
libtpu: 0.0.40
codegen_flags: <defaults>
</compile_context>

<pallas_src>
import functools

import jax
import jax.numpy as jnp
from jax import lax
from jax.experimental import pallas as pl
from jax.experimental.pallas import tpu as pltpu


# ------------------------------- helpers ----------------------------------- #

def _round_up(v, m):
    return (v + m - 1) // m * m


def _cdiv(a, b):
    return (a + b - 1) // b


def _inv_pow(t, beta):
    """t ** (-beta) for t >= 1 using EUP-friendly ops (no pow, no exact divide)."""
    beta = float(beta)
    if beta == 0.75:
        return lax.rsqrt(t * jnp.sqrt(t))          # t^-3/4, 2 EUP ops + 1 VPU mul
    if beta == 0.5:
        return lax.rsqrt(t)
    if beta == 1.0:
        return 1.0 / t
    if beta == 0.0:
        return jnp.ones_like(t)
    return jnp.exp(-beta * jnp.log(t))             # general case


def _band_mask(C, local_size):
    """0/1 mask: B[c, c'] = 1 iff c' is inside c's channel window (odd local_size)."""
    pad = (local_size - 1) // 2
    c = jnp.arange(C)
    off = c[None, :] - c[:, None]                  # c' - c
    in_window = (off >= -pad) & (off <= local_size - 1 - pad)
    return in_window.astype(jnp.bfloat16)


# ----------------------------- kernel bodies ------------------------------- #

def _lrn_kernel_ls1(x_ref, o_ref, *, alpha, beta):
    """local_size == 1: purely elementwise on a flat (rows, lanes) tile."""
    x = x_ref[...].astype(jnp.float32)
    t = 1.0 + alpha * (x * x)
    o_ref[...] = (x * _inv_pow(t, beta)).astype(o_ref.dtype)


def _lrn_kernel_band(band_ref, x_ref, o_ref, *, scale, beta, bn):
    """General odd local_size: bf16 banded (C,C) x (C,T) MXU matmul per image."""
    band = band_ref[...]                           # (C, C) bf16 0/1 mask, resident
    for n in range(bn):                            # static unroll, bn is small
        x = x_ref[n].astype(jnp.float32)           # (C, T)
        x2 = (x * x).astype(jnp.bfloat16)
        acc = jnp.dot(band, x2, preferred_element_type=jnp.float32)
        t = 1.0 + scale * acc                      # scale = alpha / local_size (f32)
        o_ref[n] = (x * _inv_pow(t, beta)).astype(o_ref.dtype)


# ------------------------------- wrapper ------------------------------------ #

def lrn_pallas(x, local_size=1, alpha=1.0, beta=0.75, target_block_bytes=4 << 20):
    """x: (N, C, H, W), NCHW layout, ACROSS_CHANNELS=True, odd local_size."""
    if local_size % 2 != 1:
        raise ValueError("lrn_pallas: only odd local_size is supported")

    N, C, H, W = x.shape
    HW = H * W
    itemsize = jnp.dtype(x.dtype).itemsize
    dsem = ("parallel", "parallel")

    def lane_tile(max_bytes_per_row_block, rows_per_block):
        max_lanes = max(128, (max_bytes_per_row_block // (rows_per_block * itemsize)) // 128 * 128)
        if HW <= max_lanes:
            return HW                                   # full spatial dim (always legal)
        return max_lanes                                # multiple of 128; ragged last tile OK

    if local_size == 1:
        # ---- elementwise path: flat (N*C, HW) view, independent of C ---- #
        rows = N * C
        x2d = x.reshape(rows, HW)
        T = lane_tile(target_block_bytes, min(rows, 256))
        max_rows = max(8, (target_block_bytes // (T * itemsize)) // 8 * 8)
        bR = rows if rows <= max_rows else max_rows     # full dim or multiple of 8
        grid = (_cdiv(rows, bR), _cdiv(HW, T))

        block_bytes = bR * T * itemsize
        est = 4 * block_bytes                           # (in + out) x double-buffer
        ckw = {}
        if est > 30 * 1024 * 1024:
            ckw["vmem_limit_bytes"] = min(int(est * 3 // 2), 48 * 1024 * 1024)

        kernel = functools.partial(_lrn_kernel_ls1, alpha=float(alpha), beta=float(beta))
        out2d = pl.pallas_call(
            kernel,
            out_shape=jax.ShapeDtypeStruct((rows, HW), x.dtype),
            grid_spec=pltpu.PrefetchScalarGridSpec(
                num_scalar_prefetch=0,
                grid=grid,
                in_specs=[pl.BlockSpec((bR, T), lambda r, j: (r, j))],
                out_specs=pl.BlockSpec((bR, T), lambda r, j: (r, j)),
            ),
            compiler_params=pltpu.CompilerParams(dimension_semantics=dsem, **ckw),
        )(x2d)
        return out2d.reshape(N, C, H, W)

    # ---- banded-MXU path: (N, C, HW) view, lane-dense spatial tiles ---- #
    x_flat = x.reshape(N, C, HW)
    T = lane_tile(target_block_bytes, C)
    n_hw = _cdiv(HW, T)

    # Fold several images per grid step when one image's slab is small, but keep
    # >= 2 grid steps so both v7x TensorCores get work.
    bN = 1
    if n_hw == 1:
        per_img = C * T * itemsize
        bN = max(1, min(N, target_block_bytes // max(per_img, 1)))
        if N >= 2:
            bN = min(bN, max(1, N // 2))
    grid = (_cdiv(N, bN), n_hw)

    band = _band_mask(C, local_size)                    # (C, C) bf16, stays resident
    block_bytes = bN * C * T * itemsize
    est = 4 * block_bytes + band.size * 2
    ckw = {}
    if est > 30 * 1024 * 1024:
        ckw["vmem_limit_bytes"] = min(int(est * 3 // 2), 48 * 1024 * 1024)

    kernel = functools.partial(
        _lrn_kernel_band,
        scale=float(alpha) / float(local_size),
        beta=float(beta),
        bn=bN,
    )
    out_flat = pl.pallas_call(
        kernel,
        out_shape=jax.ShapeDtypeStruct((N, C, HW), x.dtype),
        grid_spec=pltpu.PrefetchScalarGridSpec(
            num_scalar_prefetch=0,
            grid=grid,
            in_specs=[
                pl.BlockSpec((C, C), lambda n, j: (0, 0)),        # band, resident
                pl.BlockSpec((bN, C, T), lambda n, j: (n, 0, j)),
            ],
            out_specs=pl.BlockSpec((bN, C, T), lambda n, j: (n, 0, j)),
        ),
        compiler_params=pltpu.CompilerParams(dimension_semantics=dsem, **ckw),
    )(band, x_flat)
    return out_flat.reshape(N, C, H, W)


# ------------------------------- reference ---------------------------------- #

def lrn_reference(x, local_size=1, alpha=1.0, beta=0.75):
    """Pure-JAX reference matching the PyTorch module (odd local_size)."""
    N, C, H, W = x.shape
    pad = (local_size - 1) // 2
    x2 = x * x
    x2_pad = jnp.pad(x2, ((0, 0), (pad, pad), (0, 0), (0, 0)))
    windows = jnp.stack([x2_pad[:, k:k + C] for k in range(local_size)], axis=0)
    avg = windows.sum(axis=0) / float(local_size)
    div = jnp.power(1.0 + alpha * avg, beta)
    return x / div


# --------------------------------- main -------------------------------------- #

if __name__ == "__main__":
    key = jax.random.PRNGKey(0)
    k0, k1 = jax.random.split(key)

    # Module defaults: local_size=1, alpha=1.0, beta=0.75, ACROSS_CHANNELS=True.
    N, C, H, W = 2, 4, 16, 16
    x = jax.random.normal(k0, (N, C, H, W), dtype=jnp.float32)
    out = jax.block_until_ready(lrn_pallas(x, local_size=1, alpha=1.0, beta=0.75))
    ref = lrn_reference(x, local_size=1, alpha=1.0, beta=0.75)
    assert out.shape == (N, C, H, W) and out.dtype == x.dtype
    assert jnp.allclose(out, ref, atol=1e-4, rtol=1e-4), "local_size=1 mismatch vs reference"

    # Narrow-dtype path: bf16 stays bf16 at the HBM boundary (kernel upcasts internally).
    x_bf16 = x.astype(jnp.bfloat16)
    out_bf16 = jax.block_until_ready(lrn_pallas(x_bf16, local_size=1, alpha=1.0, beta=0.75))
    ref_bf16 = lrn_reference(x_bf16.astype(jnp.float32), local_size=1, alpha=1.0, beta=0.75)
    assert out_bf16.dtype == jnp.bfloat16
    assert jnp.allclose(out_bf16.astype(jnp.float32), ref_bf16, atol=2e-2, rtol=2e-2), \
        "bf16 local_size=1 mismatch vs reference"

    # Banded-MXU path: odd window > 1 (bf16 MXU pass with f32 accumulate -> looser tol).
    x2 = jax.random.normal(k1, (2, 8, 16, 16), dtype=jnp.float32)
    out2 = jax.block_until_ready(lrn_pallas(x2, local_size=5, alpha=1.0, beta=0.75))
    ref2 = lrn_reference(x2, local_size=5, alpha=1.0, beta=0.75)
    assert jnp.allclose(out2, ref2, atol=1e-2, rtol=1e-2), "local_size=5 mismatch vs reference"

    print("KERNEL_OK")
</pallas_src>

<mosaic_0001>
module attributes {stable_mosaic.version = 11 : i64} {
  func.func @_lrn_kernel_ls1(%arg0: i32, %arg1: i32, %arg2: memref<8x256xf32, #tpu.memory_space<vmem>>, %arg3: memref<8x256xf32, #tpu.memory_space<vmem>>) attributes {dimension_semantics = [#tpu.dimension_semantics<parallel>, #tpu.dimension_semantics<parallel>], iteration_bounds = array<i64: 1, 1>, scalar_prefetch = 0 : i64, scratch_operands = 0 : i64, tpu.core_type = #tpu.core_type<tc>, window_params = [{transform_indices = @transform_0, window_bounds = array<i64: 8, 256>}, {transform_indices = @transform_1, window_bounds = array<i64: 8, 256>}]} {
    %c0 = arith.constant 0 : index
    %c0_0 = arith.constant 0 : index
    %0 = vector.load %arg2[%c0, %c0_0] : memref<8x256xf32, #tpu.memory_space<vmem>>, vector<8x256xf32>
    %1 = arith.mulf %0, %0 : vector<8x256xf32>
    %cst = arith.constant 1.000000e+00 : f32
    %2 = vector.broadcast %cst : f32 to vector<8x256xf32>
    %3 = arith.mulf %2, %1 : vector<8x256xf32>
    %cst_1 = arith.constant 1.000000e+00 : f32
    %4 = vector.broadcast %cst_1 : f32 to vector<8x256xf32>
    %5 = arith.addf %4, %3 : vector<8x256xf32>
    %6 = math.sqrt %5 : vector<8x256xf32>
    %7 = arith.mulf %5, %6 : vector<8x256xf32>
    %8 = math.rsqrt %7 : vector<8x256xf32>
    %9 = arith.mulf %0, %8 : vector<8x256xf32>
    %c0_2 = arith.constant 0 : index
    %c0_3 = arith.constant 0 : index
    %10 = vector.load %arg3[%c0_2, %c0_3] : memref<8x256xf32, #tpu.memory_space<vmem>>, vector<8x256xf32>
    tpu.vector_store %arg3[%c0_2, %c0_3], %9 {strides = array<i32>} : memref<8x256xf32, #tpu.memory_space<vmem>>, vector<8x256xf32>,
    return
  }
  func.func @transform_0(%arg0: i32, %arg1: i32) -> (i32, i32) {
    %c0_i32 = arith.constant 0 : i32
    return %arg0, %arg1 : i32, i32
  }
  func.func @transform_1(%arg0: i32, %arg1: i32) -> (i32, i32) {
    %c0_i32 = arith.constant 0 : i32
    return %arg0, %arg1 : i32, i32
  }
}

</mosaic_0001>

<llo_original>
// kernel: tpu_custom_call.1
$region0: #{tpu_custom_call.1}
  #allocation0 [shape = 'u32[]', space=smem, size = 0x4, offset = 0x4, fixed_abs, tag = 'smem constant byte address 0x4 - core index']
  #allocation1 [shape = 'u32[144,128]{1,0:T(1,128)}', space=vmem, size = 0x12000, scoped, tag = 'internal scratch']
  %s0 = inlined_call_operand.hbm [shape: f32[8,256], index: 0, kind: input, shape index: {}]
  %s1 = inlined_call_operand.hbm [shape: f32[8,256], index: 1, kind: output, shape index: {}]
  %s2 = sld [smem:[#allocation0]]
  $region18: #{tpu_custom_call.1} parent=0
    _
  %s4 = ssub.s32 1, %s2
  %s5 = scalar_select 0, %s4, %s2
  $region1: #{tpu_custom_call.1} parent=0
    #allocation2 [shape = 'u8[8192]{0}', space=vmem, size = 0x2000, scoped, tag = 'input window, operand 0, single buffered']
    #allocation3 [shape = 's32[1]{0}', space=sflag, size = 0x4, scoped, tag = 'scoped memory for tpu_custom_call.1']
    #allocation4 [shape = 's32[1]{0}', space=sflag, size = 0x4, scoped, tag = 'scoped memory for tpu_custom_call.1']
    #allocation5 [shape = 'u8[8192]{0}', space=vmem, size = 0x2000, scoped, tag = 'output window, operand 0, single buffered']
    %6 = vsyncpa [#allocation3], 0
    %7 = vsyncpa [#allocation4], 0
    // Predicated region
    $region2: #{tpu_custom_call.1} parent=1 // pred_check
      _
    $region3: #{tpu_custom_call.1} parent=1 // pred_check_branch
      %9 = sbr.rel (0) target = $region5
    $region4: #{tpu_custom_call.1} parent=1 // pred_region
      %s11 = ssub.s32 256, 256
      %12 = vsyncadd [#allocation3], %s11
      %s14 = sshll.u32 [#allocation2], 4
      %s15 = int_to_ptr.vmem [resolvable:$true] %s14
      %17 = dma.hbm_to_vmem [thread:$0]  %s0, 256, %s15, [#allocation3]
    $region5: #{tpu_custom_call.1} parent=1 // pred_fallthru
      _
    // Predicated region
    $region6: #{tpu_custom_call.1} parent=1 // pred_check
      _
    $region7: #{tpu_custom_call.1} parent=1 // pred_check_branch
      %19 = sbr.rel (0) target = $region9
    $region8: #{tpu_custom_call.1} parent=1 // pred_region
      %20 = dma.done [#allocation3], 256
    $region9: #{tpu_custom_call.1} parent=1 // pred_fallthru
      _
    %v21 = vld [vmem:[#allocation2] sm:$0xff]
    %v22 = vld [vmem:[#allocation2 + $0x8] sm:$0xff]
    %v23 = vmul.f32 %v21, %v21
    %v24 = vmul.f32 %v22, %v22
    %v25 = vadd.f32 %v23, 1.0
    %v26 = vadd.f32 %v24, 1.0
    %v27 = vrsqrt.pop %v25
    %v28 = vmul.f32 %v25, %v27
    %vm29 = vcmp.eq.f32.partialorder %v25, inf
    %v30 = vsel %vm29, %v25, %v28
    %vm31 = vcmp.eq.f32.partialorder %v25, 0.0
    %v32 = vand.u32 %v25, 2147483648
    %v33 = vsel %vm31, %v32, %v30
    %v34 = vrsqrt.pop %v26
    %v35 = vmul.f32 %v26, %v34
    %vm36 = vcmp.eq.f32.partialorder %v26, inf
    %v37 = vsel %vm36, %v26, %v35
    %vm38 = vcmp.eq.f32.partialorder %v26, 0.0
    %v39 = vand.u32 %v26, 2147483648
    %v40 = vsel %vm38, %v39, %v37
    %v41 = vmul.f32 %v25, %v33
    %v42 = vmul.f32 %v26, %v40
    %v43 = vrsqrt.pop %v41
    %v44 = vrsqrt.pop %v42
    %v45 = vmul.f32 %v21, %v43
    %v46 = vmul.f32 %v22, %v44
    %47 = vst [vmem:[#allocation5] sm:$0xff] %v45
    %48 = vst [vmem:[#allocation5 + $0x8] sm:$0xff] %v46
    // Predicated region
    $region10: #{tpu_custom_call.1} parent=1 // pred_check
      _
    $region11: #{tpu_custom_call.1} parent=1 // pred_check_branch
      %50 = sbr.rel (0) target = $region13
    $region12: #{tpu_custom_call.1} parent=1 // pred_region
      %s52 = ssub.s32 256, 256
      %53 = vsyncadd [#allocation4], %s52
      %s55 = sshll.u32 [#allocation5], 4
      %s56 = int_to_ptr.vmem [resolvable:$true] %s55
      %58 = dma.vmem_to_hbm [thread:$0]  %s56, 256, %s1, [#allocation4]
    $region13: #{tpu_custom_call.1} parent=1 // pred_fallthru
      _
    // Predicated region
    $region14: #{tpu_custom_call.1} parent=1 // pred_check
      _
    $region15: #{tpu_custom_call.1} parent=1 // pred_check_branch
      %60 = sbr.rel (0) target = $region17
    $region16: #{tpu_custom_call.1} parent=1 // pred_region
      %61 = dma.done [#allocation4], 256
    $region17: #{tpu_custom_call.1} parent=1 // pred_fallthru
      _
    %62 = vsyncpa [#allocation3], 1
    %63 = vsyncpa [#allocation4], 1

</llo_original>
